<compile_context>
chip_gen: v5e
topology: v5e:2x2
jax: 0.10.0
libtpu: 0.0.40
codegen_flags: <defaults>
</compile_context>

<pallas_src>
import numpy as np
import jax
import jax.numpy as jnp
from jax import lax
from jax.experimental import pallas as pl
from jax.experimental.pallas import tpu as pltpu

ALPHA = 0.25
BOXES_PER_ROW = 128                 # boxes per 2-D row (lane width of the box view)
LOC_LANES = 4 * BOXES_PER_ROW       # 512 lanes: 128 boxes x 4 interleaved coords


def _make_kernel(C, R, TM, need_mask):
    """Build the focal-loss kernel for a given class count / tiling (static)."""
    cls_lanes = BOXES_PER_ROW * C

    def kernel(*refs):
        if C > 1:
            (sel4_ref, selc_ref, repc_ref, cid_ref,
             loc_p_ref, loc_t_ref, cls_p_ref, cls_t_ref,
             loc_out_ref, cls_out_ref, pos_out_ref) = refs
        else:
            (sel4_ref,
             loc_p_ref, loc_t_ref, cls_p_ref, cls_t_ref,
             loc_out_ref, cls_out_ref, pos_out_ref) = refs

        i = pl.program_id(0)
        base = i * TM

        # ---------------- masks (per box) ----------------
        ct = cls_t_ref[...]                                       # (TM, 128) int32
        if need_mask:
            vrow = (base + lax.broadcasted_iota(jnp.int32, (TM, BOXES_PER_ROW), 0)) < R
            pos = jnp.logical_and(ct > 0, vrow)                   # positive anchors
            posneg = jnp.logical_and(ct > -1, vrow)               # non-ignored anchors
        else:
            pos = ct > 0
            posneg = ct > -1
        pos_f = pos.astype(jnp.float32)
        posneg_f = posneg.astype(jnp.float32)

        # ---------------- localization loss (smooth-L1 variant) ----------------
        diff = jnp.abs(loc_t_ref[...].astype(jnp.float32)
                       - loc_p_ref[...].astype(jnp.float32))      # (TM, 512)
        if need_mask:
            vloc = (base + lax.broadcasted_iota(jnp.int32, (TM, LOC_LANES), 0)) < R
            diff = jnp.where(vloc, diff, 0.0)                     # kill garbage rows
        smooth = jnp.where(diff <= (1.0 / 9.0),
                           0.5 * 9.0 * diff * diff,
                           diff - 0.5 / 9.0)
        # Sum the 4 interleaved coords of each box on the MXU: (TM,512)@(512,128).
        per_box_loc = jnp.dot(smooth, sel4_ref[...],
                              preferred_element_type=jnp.float32)  # (TM, 128)
        loc_partial = per_box_loc * pos_f

        # ---------------- classification loss (focal_loss_alt) ----------------
        x = cls_p_ref[...].astype(jnp.float32)                    # (TM, 128*C)
        if need_mask:
            vcls = (base + lax.broadcasted_iota(jnp.int32, (TM, cls_lanes), 0)) < R
            x = jnp.where(vcls, x, 0.0)
        if C == 1:
            # one_hot(y, 1+C)[:, 1:] == (y == 1)
            t = (ct == 1).astype(jnp.float32)                     # (TM, 128)
        else:
            # Repeat each box label across its C class lanes via a 0/1 matmul, then
            # compare with the per-lane class id (both exact small-integer floats).
            ct_rep = jnp.dot(ct.astype(jnp.float32), repc_ref[...],
                             preferred_element_type=jnp.float32)  # (TM, 128*C)
            t = (jnp.abs(ct_rep - cid_ref[...]) < 0.5).astype(jnp.float32)
        xt = x * (2.0 * t - 1.0)
        z = 2.0 * xt + 1.0
        w = ALPHA * t + (1.0 - ALPHA) * (1.0 - t)
        # -log(sigmoid(z)) == softplus(-z) = max(-z, 0) + log(1 + exp(-|z|))
        neg_log_sig = jnp.maximum(-z, 0.0) + jnp.log(1.0 + jnp.exp(-jnp.abs(z)))
        loss = 0.5 * w * neg_log_sig                              # (TM, 128*C)
        if C == 1:
            per_box_cls = loss                                    # (TM, 128)
        else:
            per_box_cls = jnp.dot(loss, selc_ref[...],
                                  preferred_element_type=jnp.float32)  # (TM, 128)
        cls_partial = per_box_cls * posneg_f

        # ---------------- per-tile partial sums (lane-dense (1,1,128) blocks) ----
        loc_out_ref[...] = jnp.sum(loc_partial, axis=0, keepdims=True).reshape(1, 1, BOXES_PER_ROW)
        cls_out_ref[...] = jnp.sum(cls_partial, axis=0, keepdims=True).reshape(1, 1, BOXES_PER_ROW)
        pos_out_ref[...] = jnp.sum(pos_f, axis=0, keepdims=True).reshape(1, 1, BOXES_PER_ROW)

    return kernel


def focal_loss_forward(loc_preds, loc_targets, cls_preds, cls_targets,
                       num_classes=1, tile_rows=256):
    C = int(num_classes)
    B, num_boxes = cls_targets.shape
    N = B * num_boxes

    # ---- flatten (pure reshapes, no data movement) ----
    loc_p = loc_preds.reshape(-1)
    loc_t = loc_targets.reshape(-1)
    cls_p = cls_preds.reshape(-1)
    cls_t = cls_targets.reshape(-1)
    if cls_t.dtype != jnp.int32:
        cls_t = cls_t.astype(jnp.int32)

    # Only if the box count is not a multiple of 128: append <128 "ignore" boxes so the
    # lane-dense 2-D view is an exact reshape.  (Common detection shapes skip this.)
    pad = (-N) % BOXES_PER_ROW
    if pad:
        loc_p = jnp.concatenate([loc_p, jnp.zeros((pad * 4,), loc_p.dtype)])
        loc_t = jnp.concatenate([loc_t, jnp.zeros((pad * 4,), loc_t.dtype)])
        cls_p = jnp.concatenate([cls_p, jnp.zeros((pad * C,), cls_p.dtype)])
        cls_t = jnp.concatenate([cls_t, jnp.full((pad,), -1, jnp.int32)])
    Np = N + pad
    R = Np // BOXES_PER_ROW

    loc_p2 = loc_p.reshape(R, LOC_LANES)            # (R, 512)
    loc_t2 = loc_t.reshape(R, LOC_LANES)
    cls_p2 = cls_p.reshape(R, BOXES_PER_ROW * C)    # (R, 128*C)
    cls_t2 = cls_t.reshape(R, BOXES_PER_ROW)        # (R, 128)

    # ---- tile-size choice: big rows-per-tile, but keep the double-buffered footprint
    #      well under the 16 MiB scoped-VMEM default (v5e) ----
    per_row_bytes = (2 * LOC_LANES * loc_p2.dtype.itemsize
                     + BOXES_PER_ROW * C * cls_p2.dtype.itemsize
                     + BOXES_PER_ROW * 4)
    vmem_budget = 12 * 1024 * 1024
    cap = max(8, (vmem_budget // (2 * per_row_bytes)) // 8 * 8)
    limit = min(int(tile_rows), int(cap))
    if R <= limit:
        TM = R                      # single tile; block == full array rows (allowed)
    else:
        TM = max(8, (limit // 8) * 8)
    n_tiles = -(-R // TM)
    need_mask = (R % TM) != 0

    # ---- constant 0/1 selectors for the MXU per-box reductions (fetched once;
    #      Pallas skips the re-copy when a block index is unchanged) ----
    sel4 = (jnp.arange(LOC_LANES, dtype=jnp.int32)[:, None] // 4
            == jnp.arange(BOXES_PER_ROW, dtype=jnp.int32)[None, :]).astype(jnp.float32)

    inputs = [sel4]
    in_specs = [pl.BlockSpec((LOC_LANES, BOXES_PER_ROW), lambda i: (0, 0))]
    if C > 1:
        selc = (jnp.arange(BOXES_PER_ROW * C, dtype=jnp.int32)[:, None] // C
                == jnp.arange(BOXES_PER_ROW, dtype=jnp.int32)[None, :]).astype(jnp.float32)
        repc = selc.T                                                   # (128, 128*C)
        cid = (jnp.arange(BOXES_PER_ROW * C, dtype=jnp.int32)[None, :] % C
               + 1).astype(jnp.float32)                                 # (1, 128*C)
        inputs += [selc, repc, cid]
        in_specs += [pl.BlockSpec((BOXES_PER_ROW * C, BOXES_PER_ROW), lambda i: (0, 0)),
                     pl.BlockSpec((BOXES_PER_ROW, BOXES_PER_ROW * C), lambda i: (0, 0)),
                     pl.BlockSpec((1, BOXES_PER_ROW * C), lambda i: (0, 0))]

    inputs += [loc_p2, loc_t2, cls_p2, cls_t2]
    in_specs += [pl.BlockSpec((TM, LOC_LANES), lambda i: (i, 0)),
                 pl.BlockSpec((TM, LOC_LANES), lambda i: (i, 0)),
                 pl.BlockSpec((TM, BOXES_PER_ROW * C), lambda i: (i, 0)),
                 pl.BlockSpec((TM, BOXES_PER_ROW), lambda i: (i, 0))]

    out_shape = (jax.ShapeDtypeStruct((n_tiles, 1, BOXES_PER_ROW), jnp.float32),) * 3
    out_specs = (pl.BlockSpec((1, 1, BOXES_PER_ROW), lambda i: (i, 0, 0)),) * 3

    kernel = _make_kernel(C, R, TM, need_mask)

    cost = pl.CostEstimate(
        flops=int(N) * (40 + 30 * C),
        transcendentals=2 * int(N) * C,
        bytes_accessed=int(loc_p2.size * loc_p2.dtype.itemsize * 2
                           + cls_p2.size * cls_p2.dtype.itemsize
                           + cls_t2.size * 4
                           + 3 * n_tiles * BOXES_PER_ROW * 4),
    )

    loc_parts, cls_parts, pos_parts = pl.pallas_call(
        kernel,
        grid=(n_tiles,),
        in_specs=in_specs,
        out_specs=out_specs,
        out_shape=out_shape,
        compiler_params=pltpu.CompilerParams(dimension_semantics=("parallel",)),
        cost_estimate=cost,
    )(*inputs)

    # Tiny final reductions + divisions (matches the PyTorch reference semantics,
    # including NaN/Inf when there are no positive anchors).
    num_pos = jnp.sum(pos_parts)
    loc_loss = jnp.sum(loc_parts) / (num_pos * 4.0)
    cls_loss = jnp.sum(cls_parts) / num_pos
    return loc_loss, cls_loss


def reference_forward(loc_preds, loc_targets, cls_preds, cls_targets, num_classes=1):
    """Pure-numpy replica of the PyTorch forward (gather-based), for verification."""
    loc_preds = np.asarray(loc_preds, np.float32)
    loc_targets = np.asarray(loc_targets, np.float32)
    cls_preds = np.asarray(cls_preds, np.float32)
    cls_targets = np.asarray(cls_targets, np.int64)

    pos = cls_targets > 0
    num_pos = float(pos.sum())

    mlp = loc_preds[pos].reshape(-1, 4)
    mlt = loc_targets[pos].reshape(-1, 4)
    diff = np.abs(mlt - mlp)
    loc_loss = np.where(diff <= 1.0 / 9.0, 0.5 * 9.0 * diff ** 2, diff - 0.5 / 9.0).mean()

    pos_neg = cls_targets > -1
    x = cls_preds[pos_neg].reshape(-1, num_classes)
    y = cls_targets[pos_neg]
    t = np.eye(1 + num_classes, dtype=np.float32)[y][:, 1:]
    xt = x * (2.0 * t - 1.0)
    pt = 1.0 / (1.0 + np.exp(-(2.0 * xt + 1.0)))
    w = ALPHA * t + (1.0 - ALPHA) * (1.0 - t)
    cls_loss = (-w * np.log(pt) / 2.0).sum() / num_pos
    return np.float32(loc_loss), np.float32(cls_loss)


if __name__ == "__main__":
    # ---- case 1: module defaults (num_classes=1), lane-aligned box count ----
    B, num_boxes, C = 2, 512, 1
    k1, k2, k3, k4 = jax.random.split(jax.random.PRNGKey(0), 4)
    loc_preds = jax.random.normal(k1, (B, num_boxes, 4), jnp.float32)
    loc_targets = jax.random.normal(k2, (B, num_boxes, 4), jnp.float32)
    cls_preds = jax.random.normal(k3, (B, num_boxes, C), jnp.float32)
    # targets in {-1 (ignore), 0 (background), 1..C (classes)}
    cls_targets = jax.random.randint(k4, (B, num_boxes), -1, C + 1, jnp.int32)

    loc_loss, cls_loss = focal_loss_forward(
        loc_preds, loc_targets, cls_preds, cls_targets, num_classes=C)
    jax.block_until_ready((loc_loss, cls_loss))
    ref_loc, ref_cls = reference_forward(
        loc_preds, loc_targets, cls_preds, cls_targets, num_classes=C)
    np.testing.assert_allclose(np.asarray(loc_loss), ref_loc, rtol=1e-3, atol=1e-3)
    np.testing.assert_allclose(np.asarray(cls_loss), ref_cls, rtol=1e-3, atol=1e-3)

    # ---- case 2: multi-class, ragged box count, small tiles -> exercises the tiny
    #      tail pad, the C>1 selector path, the multi-tile parallel grid and the
    #      in-kernel ragged-row mask ----
    B2, nb2, C2 = 2, 2200, 2
    k5, k6, k7, k8 = jax.random.split(jax.random.PRNGKey(1), 4)
    lp2 = jax.random.normal(k5, (B2, nb2, 4), jnp.float32)
    lt2 = jax.random.normal(k6, (B2, nb2, 4), jnp.float32)
    cp2 = jax.random.normal(k7, (B2, nb2, C2), jnp.float32)
    ct2 = jax.random.randint(k8, (B2, nb2), -1, C2 + 1, jnp.int32)

    loc2, cls2 = focal_loss_forward(lp2, lt2, cp2, ct2, num_classes=C2, tile_rows=16)
    jax.block_until_ready((loc2, cls2))
    r_loc2, r_cls2 = reference_forward(lp2, lt2, cp2, ct2, num_classes=C2)
    np.testing.assert_allclose(np.asarray(loc2), r_loc2, rtol=1e-3, atol=1e-3)
    np.testing.assert_allclose(np.asarray(cls2), r_cls2, rtol=1e-3, atol=1e-3)

    print("KERNEL_OK")
</pallas_src>

<mosaic_0001>
module attributes {stable_mosaic.version = 11 : i64} {
  func.func @kernel(%arg0: i32, %arg1: memref<512x128xf32, #tpu.memory_space<vmem>>, %arg2: memref<8x512xf32, #tpu.memory_space<vmem>>, %arg3: memref<8x512xf32, #tpu.memory_space<vmem>>, %arg4: memref<8x128xf32, #tpu.memory_space<vmem>>, %arg5: memref<8x128xi32, #tpu.memory_space<vmem>>, %arg6: memref<1x1x128xf32, #tpu.memory_space<vmem>>, %arg7: memref<1x1x128xf32, #tpu.memory_space<vmem>>, %arg8: memref<1x1x128xf32, #tpu.memory_space<vmem>>) attributes {dimension_semantics = [#tpu.dimension_semantics<parallel>], iteration_bounds = array<i64: 1>, scalar_prefetch = 0 : i64, scratch_operands = 0 : i64, tpu.core_type = #tpu.core_type<tc>, window_params = [{pipeline_mode = #tpu.pipeline_mode<synchronous>, transform_indices = @transform_0, window_bounds = array<i64: 512, 128>}, {transform_indices = @transform_1, window_bounds = array<i64: 8, 512>}, {transform_indices = @transform_2, window_bounds = array<i64: 8, 512>}, {transform_indices = @transform_3, window_bounds = array<i64: 8, 128>}, {transform_indices = @transform_4, window_bounds = array<i64: 8, 128>}, {transform_indices = @transform_5, window_bounds = array<i64: 1, 1, 128>}, {transform_indices = @transform_6, window_bounds = array<i64: 1, 1, 128>}, {transform_indices = @transform_7, window_bounds = array<i64: 1, 1, 128>}]} {
    %c0 = arith.constant 0 : index
    %c0_0 = arith.constant 0 : index
    %0 = vector.load %arg5[%c0, %c0_0] : memref<8x128xi32, #tpu.memory_space<vmem>>, vector<8x128xi32>
    %c0_i32 = arith.constant 0 : i32
    %1 = vector.broadcast %c0_i32 : i32 to vector<8x128xi32>
    %2 = arith.cmpi sgt, %0, %1 : vector<8x128xi32>
    %c-1_i32 = arith.constant -1 : i32
    %3 = vector.broadcast %c-1_i32 : i32 to vector<8x128xi32>
    %4 = arith.cmpi sgt, %0, %3 : vector<8x128xi32>
    %5 = arith.extui %2 : vector<8x128xi1> to vector<8x128xi32>
    %6 = arith.sitofp %5 : vector<8x128xi32> to vector<8x128xf32>
    %7 = arith.extui %4 : vector<8x128xi1> to vector<8x128xi32>
    %8 = arith.sitofp %7 : vector<8x128xi32> to vector<8x128xf32>
    %c0_1 = arith.constant 0 : index
    %c0_2 = arith.constant 0 : index
    %9 = vector.load %arg3[%c0_1, %c0_2] : memref<8x512xf32, #tpu.memory_space<vmem>>, vector<8x512xf32>
    %c0_3 = arith.constant 0 : index
    %c0_4 = arith.constant 0 : index
    %10 = vector.load %arg2[%c0_3, %c0_4] : memref<8x512xf32, #tpu.memory_space<vmem>>, vector<8x512xf32>
    %11 = arith.subf %9, %10 : vector<8x512xf32>
    %12 = math.absf %11 : vector<8x512xf32>
    %cst = arith.constant 0.111111112 : f32
    %13 = vector.broadcast %cst : f32 to vector<8x512xf32>
    %14 = arith.cmpf ole, %12, %13 : vector<8x512xf32>
    %cst_5 = arith.constant 4.500000e+00 : f32
    %15 = vector.broadcast %cst_5 : f32 to vector<8x512xf32>
    %16 = arith.mulf %15, %12 : vector<8x512xf32>
    %17 = arith.mulf %16, %12 : vector<8x512xf32>
    %cst_6 = arith.constant 0.055555556 : f32
    %18 = vector.broadcast %cst_6 : f32 to vector<8x512xf32>
    %19 = arith.subf %12, %18 : vector<8x512xf32>
    %20 = arith.select %14, %17, %19 : vector<8x512xi1>, vector<8x512xf32>
    %c0_7 = arith.constant 0 : index
    %c0_8 = arith.constant 0 : index
    %21 = vector.load %arg1[%c0_7, %c0_8] : memref<512x128xf32, #tpu.memory_space<vmem>>, vector<512x128xf32>
    %cst_9 = arith.constant dense<0.000000e+00> : vector<8x128xf32>
    %22 = tpu.matmul %20, %21, %cst_9 {dimension_numbers = #tpu.dot_dimension_numbers<[1], [0], [0], [1], [0, 0, 1, 1], [], []>} : vector<8x512xf32>, vector<512x128xf32>, vector<8x128xf32> -> vector<8x128xf32>
    %23 = arith.mulf %22, %6 : vector<8x128xf32>
    %c0_10 = arith.constant 0 : index
    %c0_11 = arith.constant 0 : index
    %24 = vector.load %arg4[%c0_10, %c0_11] : memref<8x128xf32, #tpu.memory_space<vmem>>, vector<8x128xf32>
    %c1_i32 = arith.constant 1 : i32
    %25 = vector.broadcast %c1_i32 : i32 to vector<8x128xi32>
    %26 = arith.cmpi eq, %0, %25 : vector<8x128xi32>
    %27 = arith.extui %26 : vector<8x128xi1> to vector<8x128xi32>
    %28 = arith.sitofp %27 : vector<8x128xi32> to vector<8x128xf32>
    %cst_12 = arith.constant 2.000000e+00 : f32
    %29 = vector.broadcast %cst_12 : f32 to vector<8x128xf32>
    %30 = arith.mulf %29, %28 : vector<8x128xf32>
    %cst_13 = arith.constant 1.000000e+00 : f32
    %31 = vector.broadcast %cst_13 : f32 to vector<8x128xf32>
    %32 = arith.subf %30, %31 : vector<8x128xf32>
    %33 = arith.mulf %24, %32 : vector<8x128xf32>
    %cst_14 = arith.constant 2.000000e+00 : f32
    %34 = vector.broadcast %cst_14 : f32 to vector<8x128xf32>
    %35 = arith.mulf %34, %33 : vector<8x128xf32>
    %cst_15 = arith.constant 1.000000e+00 : f32
    %36 = vector.broadcast %cst_15 : f32 to vector<8x128xf32>
    %37 = arith.addf %35, %36 : vector<8x128xf32>
    %cst_16 = arith.constant 2.500000e-01 : f32
    %38 = vector.broadcast %cst_16 : f32 to vector<8x128xf32>
    %39 = arith.mulf %38, %28 : vector<8x128xf32>
    %cst_17 = arith.constant 1.000000e+00 : f32
    %40 = vector.broadcast %cst_17 : f32 to vector<8x128xf32>
    %41 = arith.subf %40, %28 : vector<8x128xf32>
    %cst_18 = arith.constant 7.500000e-01 : f32
    %42 = vector.broadcast %cst_18 : f32 to vector<8x128xf32>
    %43 = arith.mulf %42, %41 : vector<8x128xf32>
    %44 = arith.addf %39, %43 : vector<8x128xf32>
    %cst_19 = arith.constant 0.000000e+00 : f32
    %45 = vector.broadcast %cst_19 : f32 to vector<8x128xf32>
    %46 = arith.subf %45, %37 : vector<8x128xf32>
    %cst_20 = arith.constant 0.000000e+00 : f32
    %47 = vector.broadcast %cst_20 : f32 to vector<8x128xf32>
    %48 = arith.maximumf %46, %47 : vector<8x128xf32>
    %49 = math.absf %37 : vector<8x128xf32>
    %cst_21 = arith.constant 0.000000e+00 : f32
    %50 = vector.broadcast %cst_21 : f32 to vector<8x128xf32>
    %51 = arith.subf %50, %49 : vector<8x128xf32>
    %52 = math.exp %51 : vector<8x128xf32>
    %cst_22 = arith.constant 1.000000e+00 : f32
    %53 = vector.broadcast %cst_22 : f32 to vector<8x128xf32>
    %54 = arith.addf %53, %52 : vector<8x128xf32>
    %55 = math.log %54 : vector<8x128xf32>
    %56 = arith.addf %48, %55 : vector<8x128xf32>
    %cst_23 = arith.constant 5.000000e-01 : f32
    %57 = vector.broadcast %cst_23 : f32 to vector<8x128xf32>
    %58 = arith.mulf %57, %44 : vector<8x128xf32>
    %59 = arith.mulf %58, %56 : vector<8x128xf32>
    %60 = arith.mulf %59, %8 : vector<8x128xf32>
    %cst_24 = arith.constant dense<0.000000e+00> : vector<128xf32>
    %61 = vector.multi_reduction <add>, %23, %cst_24 [0] : vector<8x128xf32> to vector<128xf32>
    %62 = vector.shape_cast %61 : vector<128xf32> to vector<1x128xf32>
    %63 = vector.shape_cast %62 : vector<1x128xf32> to vector<1x1x128xf32>
    %c0_25 = arith.constant 0 : index
    %c0_26 = arith.constant 0 : index
    %c0_27 = arith.constant 0 : index
    %64 = vector.load %arg6[%c0_25, %c0_26, %c0_27] : memref<1x1x128xf32, #tpu.memory_space<vmem>>, vector<1x1x128xf32>
    tpu.vector_store %arg6[%c0_25, %c0_26, %c0_27], %63 {strides = array<i32>} : memref<1x1x128xf32, #tpu.memory_space<vmem>>, vector<1x1x128xf32>,
    %cst_28 = arith.constant dense<0.000000e+00> : vector<128xf32>
    %65 = vector.multi_reduction <add>, %60, %cst_28 [0] : vector<8x128xf32> to vector<128xf32>
    %66 = vector.shape_cast %65 : vector<128xf32> to vector<1x128xf32>
    %67 = vector.shape_cast %66 : vector<1x128xf32> to vector<1x1x128xf32>
    %c0_29 = arith.constant 0 : index
    %c0_30 = arith.constant 0 : index
    %c0_31 = arith.constant 0 : index
    %68 = vector.load %arg7[%c0_29, %c0_30, %c0_31] : memref<1x1x128xf32, #tpu.memory_space<vmem>>, vector<1x1x128xf32>
    tpu.vector_store %arg7[%c0_29, %c0_30, %c0_31], %67 {strides = array<i32>} : memref<1x1x128xf32, #tpu.memory_space<vmem>>, vector<1x1x128xf32>,
    %cst_32 = arith.constant dense<0.000000e+00> : vector<128xf32>
    %69 = vector.multi_reduction <add>, %6, %cst_32 [0] : vector<8x128xf32> to vector<128xf32>
    %70 = vector.shape_cast %69 : vector<128xf32> to vector<1x128xf32>
    %71 = vector.shape_cast %70 : vector<1x128xf32> to vector<1x1x128xf32>
    %c0_33 = arith.constant 0 : index
    %c0_34 = arith.constant 0 : index
    %c0_35 = arith.constant 0 : index
    %72 = vector.load %arg8[%c0_33, %c0_34, %c0_35] : memref<1x1x128xf32, #tpu.memory_space<vmem>>, vector<1x1x128xf32>
    tpu.vector_store %arg8[%c0_33, %c0_34, %c0_35], %71 {strides = array<i32>} : memref<1x1x128xf32, #tpu.memory_space<vmem>>, vector<1x1x128xf32>,
    return
  }
  func.func @transform_0(%arg0: i32) -> (i32, i32) {
    %c0_i32 = arith.constant 0 : i32
    %c0_i32_0 = arith.constant 0 : i32
    %c0_i32_1 = arith.constant 0 : i32
    return %c0_i32, %c0_i32_0 : i32, i32
  }
  func.func @transform_1(%arg0: i32) -> (i32, i32) {
    %c0_i32 = arith.constant 0 : i32
    %c0_i32_0 = arith.constant 0 : i32
    return %arg0, %c0_i32 : i32, i32
  }
  func.func @transform_2(%arg0: i32) -> (i32, i32) {
    %c0_i32 = arith.constant 0 : i32
    %c0_i32_0 = arith.constant 0 : i32
    return %arg0, %c0_i32 : i32, i32
  }
  func.func @transform_3(%arg0: i32) -> (i32, i32) {
    %c0_i32 = arith.constant 0 : i32
    %c0_i32_0 = arith.constant 0 : i32
    return %arg0, %c0_i32 : i32, i32
  }
  func.func @transform_4(%arg0: i32) -> (i32, i32) {
    %c0_i32 = arith.constant 0 : i32
    %c0_i32_0 = arith.constant 0 : i32
    return %arg0, %c0_i32 : i32, i32
  }
  func.func @transform_5(%arg0: i32) -> (i32, i32, i32) {
    %c0_i32 = arith.constant 0 : i32
    %c0_i32_0 = arith.constant 0 : i32
    %c0_i32_1 = arith.constant 0 : i32
    return %arg0, %c0_i32, %c0_i32_0 : i32, i32, i32
  }
  func.func @transform_6(%arg0: i32) -> (i32, i32, i32) {
    %c0_i32 = arith.constant 0 : i32
    %c0_i32_0 = arith.constant 0 : i32
    %c0_i32_1 = arith.constant 0 : i32
    return %arg0, %c0_i32, %c0_i32_0 : i32, i32, i32
  }
  func.func @transform_7(%arg0: i32) -> (i32, i32, i32) {
    %c0_i32 = arith.constant 0 : i32
    %c0_i32_0 = arith.constant 0 : i32
    %c0_i32_1 = arith.constant 0 : i32
    return %arg0, %c0_i32, %c0_i32_0 : i32, i32, i32
  }
}

</mosaic_0001>

<llo_original>
// kernel: tpu_custom_call.1
$region0: #{tpu_custom_call.1}
  #allocation0 [shape = 'u32[]', space=smem, size = 0x4, offset = 0x4, fixed_abs, tag = 'smem constant byte address 0x4 - core index']
  #allocation1 [shape = 'u32[72,128]{1,0:T(1,128)}', space=vmem, size = 0x9000, scoped, tag = 'internal scratch']
  %s0 = inlined_call_operand.hbm [shape: f32[512,128], index: 0, kind: input, shape index: {}]
  %s1 = inlined_call_operand.hbm [shape: f32[8,512], index: 1, kind: input, shape index: {}]
  %s2 = inlined_call_operand.hbm [shape: f32[8,512], index: 2, kind: input, shape index: {}]
  %s3 = inlined_call_operand.hbm [shape: f32[8,128], index: 3, kind: input, shape index: {}]
  %s4 = inlined_call_operand.hbm [shape: s32[8,128], index: 4, kind: input, shape index: {}]
  %s5 = inlined_call_operand.hbm [shape: f32[1,1,128], index: 5, kind: output, shape index: {0}]
  %s6 = inlined_call_operand.hbm [shape: f32[1,1,128], index: 6, kind: output, shape index: {1}]
  %s7 = inlined_call_operand.hbm [shape: f32[1,1,128], index: 7, kind: output, shape index: {2}]
  %8 = xla_tuple %s5, %s6, %s7
  %s9 = sld [smem:[#allocation0]]
  $region66: #{tpu_custom_call.1} parent=0
    _
  %s11 = ssub.s32 1, %s9
  %s12 = scalar_select 0, %s11, %s9
  $region1: #{tpu_custom_call.1} parent=0
    #allocation2 [shape = 'u8[262144]{0}', space=vmem, size = 0x40000, scoped, tag = 'input window, operand 0, single buffered']
    #allocation3 [shape = 's32[1]{0}', space=sflag, size = 0x4, scoped, tag = 'scoped memory for tpu_custom_call.1']
    #allocation4 [shape = 's32[1]{0}', space=sflag, size = 0x4, scoped, tag = 'scoped memory for tpu_custom_call.1']
    #allocation5 [shape = 'u8[16384]{0}', space=vmem, size = 0x4000, scoped, tag = 'input window, operand 1, single buffered']
    #allocation6 [shape = 's32[1]{0}', space=sflag, size = 0x4, scoped, tag = 'scoped memory for tpu_custom_call.1']
    #allocation7 [shape = 'u8[16384]{0}', space=vmem, size = 0x4000, scoped, tag = 'input window, operand 2, single buffered']
    #allocation8 [shape = 'u8[4096]{0}', space=vmem, size = 0x1000, scoped, tag = 'input window, operand 3, single buffered']
    #allocation9 [shape = 's32[1]{0}', space=sflag, size = 0x4, scoped, tag = 'scoped memory for tpu_custom_call.1']
    #allocation10 [shape = 'u8[4096]{0}', space=vmem, size = 0x1000, scoped, tag = 'input window, operand 4, single buffered']
    #allocation11 [shape = 'u8[512]{0}', space=vmem, size = 0x400, scoped, tag = 'output window, operand 0, single buffered']
    #allocation12 [shape = 'u8[512]{0}', space=vmem, size = 0x400, scoped, tag = 'output window, operand 1, single buffered']
    #allocation13 [shape = 's32[1]{0}', space=sflag, size = 0x4, scoped, tag = 'scoped memory for tpu_custom_call.1']
    #allocation14 [shape = 'u8[512]{0}', space=vmem, size = 0x400, scoped, tag = 'output window, operand 2, single buffered']
    %13 = vsyncpa [#allocation3], 0
    %14 = vsyncpa [#allocation6], 0
    %15 = vsyncpa [#allocation9], 0
    %16 = vsyncpa [#allocation4], 0
    %17 = vsyncpa [#allocation13], 0
    // Predicated region
    $region2: #{tpu_custom_call.1} parent=1 // pred_check
      _
    $region3: #{tpu_custom_call.1} parent=1 // pred_check_branch
      %19 = sbr.rel (0) target = $region5
    $region4: #{tpu_custom_call.1} parent=1 // pred_region
      %21 = vsyncadd [#allocation3], 0
      %s22 = sshll.u32 %s0, 4
      %s23 = int_to_ptr.hbm [resolvable:$true] %s22
      %s24 = sshll.u32 [#allocation2], 4
      %s25 = int_to_ptr.vmem [resolvable:$true] %s24
      %30 = dma.hbm_to_vmem [thread:$0]  %s23, 8192, %s25, [#allocation3], 128, 128, 8
    $region5: #{tpu_custom_call.1} parent=1 // pred_fallthru
      _
    // Predicated region
    $region6: #{tpu_custom_call.1} parent=1 // pred_check
      _
    $region7: #{tpu_custom_call.1} parent=1 // pred_check_branch
      %32 = sbr.rel (0) target = $region9
    $region8: #{tpu_custom_call.1} parent=1 // pred_region
      %34 = vsyncadd [#allocation6], 0
      %s36 = sshll.u32 %s1, 4
      %s37 = int_to_ptr.hbm [resolvable:$true] %s36
      %s38 = sshll.u32 [#allocation5], 4
      %s39 = int_to_ptr.vmem [resolvable:$true] %s38
      %41 = dma.hbm_to_vmem [thread:$0]  %s37, 512, %s39, [#allocation6]
    $region9: #{tpu_custom_call.1} parent=1 // pred_fallthru
      _
    // Predicated region
    $region10: #{tpu_custom_call.1} parent=1 // pred_check
      _
    $region11: #{tpu_custom_call.1} parent=1 // pred_check_branch
      %43 = sbr.rel (0) target = $region13
    $region12: #{tpu_custom_call.1} parent=1 // pred_region
      %45 = vsyncadd [#allocation6], 0
      %s47 = sshll.u32 %s2, 4
      %s48 = int_to_ptr.hbm [resolvable:$true] %s47
      %s49 = sshll.u32 [#allocation7], 4
      %s50 = int_to_ptr.vmem [resolvable:$true] %s49
      %52 = dma.hbm_to_vmem [thread:$0]  %s48, 512, %s50, [#allocation6]
    $region13: #{tpu_custom_call.1} parent=1 // pred_fallthru
      _
    // Predicated region
    $region14: #{tpu_custom_call.1} parent=1 // pred_check
      _
    $region15: #{tpu_custom_call.1} parent=1 // pred_check_branch
      %54 = sbr.rel (0) target = $region17
    $region16: #{tpu_custom_call.1} parent=1 // pred_region
      %56 = vsyncadd [#allocation9], 0
      %s58 = sshll.u32 %s3, 4
      %s59 = int_to_ptr.hbm [resolvable:$true] %s58
      %s60 = sshll.u32 [#allocation8], 4
      %s61 = int_to_ptr.vmem [resolvable:$true] %s60
      %63 = dma.hbm_to_vmem [thread:$0]  %s59, 128, %s61, [#allocation9]
    $region17: #{tpu_custom_call.1} parent=1 // pred_fallthru
      _
    // Predicated region
    $region18: #{tpu_custom_call.1} parent=1 // pred_check
      _
    $region19: #{tpu_custom_call.1} parent=1 // pred_check_branch
      %65 = sbr.rel (0) target = $region21
    $region20: #{tpu_custom_call.1} parent=1 // pred_region
      %67 = vsyncadd [#allocation9], 0
      %s69 = sshll.u32 %s4, 4
      %s70 = int_to_ptr.hbm [resolvable:$true] %s69
      %s71 = sshll.u32 [#allocation10], 4
      %s72 = int_to_ptr.vmem [resolvable:$true] %s71
      %74 = dma.hbm_to_vmem [thread:$0]  %s70, 128, %s72, [#allocation9]
    $region21: #{tpu_custom_call.1} parent=1 // pred_fallthru
      _
    // Predicated region
    $region22: #{tpu_custom_call.1} parent=1 // pred_check
      _
    $region23: #{tpu_custom_call.1} parent=1 // pred_check_branch
      %76 = sbr.rel (0) target = $region25
    $region24: #{tpu_custom_call.1} parent=1 // pred_region
      %78 = dma.done [#allocation3], 8192
    $region25: #{tpu_custom_call.1} parent=1 // pred_fallthru
      _
    // Predicated region
    $region26: #{tpu_custom_call.1} parent=1 // pred_check
      _
    $region27: #{tpu_custom_call.1} parent=1 // pred_check_branch
      %80 = sbr.rel (0) target = $region29
    $region28: #{tpu_custom_call.1} parent=1 // pred_region
      %82 = dma.done [#allocation6], 512
    $region29: #{tpu_custom_call.1} parent=1 // pred_fallthru
      _
    // Predicated region
    $region30: #{tpu_custom_call.1} parent=1 // pred_check
      _
    $region31: #{tpu_custom_call.1} parent=1 // pred_check_branch
      %84 = sbr.rel (0) target = $region33
    $region32: #{tpu_custom_call.1} parent=1 // pred_region
      %86 = dma.done [#allocation6], 512
    $region33: #{tpu_custom_call.1} parent=1 // pred_fallthru
      _
    // Predicated region
    $region34: #{tpu_custom_call.1} parent=1 // pred_check
      _
    $region35: #{tpu_custom_call.1} parent=1 // pred_check_branch
      %88 = sbr.rel (0) target = $region37
    $region36: #{tpu_custom_call.1} parent=1 // pred_region
      %90 = dma.done [#allocation9], 128
    $region37: #{tpu_custom_call.1} parent=1 // pred_fallthru
      _
    // Predicated region
    $region38: #{tpu_custom_call.1} parent=1 // pred_check
      _
    $region39: #{tpu_custom_call.1} parent=1 // pred_check_branch
      %92 = sbr.rel (0) target = $region41
    $region40: #{tpu_custom_call.1} parent=1 // pred_region
      %94 = dma.done [#allocation9], 128
    $region41: #{tpu_custom_call.1} parent=1 // pred_fallthru
      _
    %v95 = vld [vmem:[#allocation10] sm:$0xff]
    %vm96 = vcmp.gt.s32.totalorder %v95, 0
    %vm97 = vcmp.gt.s32.totalorder %v95, 4294967295
    %v98 = vsel %vm96, 1, 0
    %v99 = vcvt.s32.f32 %v98
    %v100 = vsel %vm97, 1, 0
    %v101 = vcvt.s32.f32 %v100
    %v102 = vld [vmem:[#allocation7] sm:$0xff]
    %v103 = vld [vmem:[#allocation7 + $0x8] sm:$0xff]
    %v104 = vld [vmem:[#allocation7 + $0x10] sm:$0xff]
    %v105 = vld [vmem:[#allocation7 + $0x18] sm:$0xff]
    %v106 = vld [vmem:[#allocation5] sm:$0xff]
    %v107 = vld [vmem:[#allocation5 + $0x8] sm:$0xff]
    %v108 = vld [vmem:[#allocation5 + $0x10] sm:$0xff]
    %v109 = vld [vmem:[#allocation5 + $0x18] sm:$0xff]
    %v110 = vsub.f32 %v102, %v106
    %v111 = vsub.f32 %v103, %v107
    %v112 = vsub.f32 %v104, %v108
    %v113 = vsub.f32 %v105, %v109
    %v114 = vand.u32 2147483647, %v110
    %v115 = vand.u32 2147483647, %v111
    %v116 = vand.u32 2147483647, %v112
    %v117 = vand.u32 2147483647, %v113
    %vm118 = vcmp.le.f32.partialorder %v114, 0.11111111
    %vm119 = vcmp.le.f32.partialorder %v115, 0.11111111
    %vm120 = vcmp.le.f32.partialorder %v116, 0.11111111
    %vm121 = vcmp.le.f32.partialorder %v117, 0.11111111
    %v122 = vmul.f32 %v114, 4.5
    %v123 = vmul.f32 %v115, 4.5
    %v124 = vmul.f32 %v116, 4.5
    %v125 = vmul.f32 %v117, 4.5
    %v126 = vmul.f32 %v122, %v114
    %v127 = vmul.f32 %v123, %v115
    %v128 = vmul.f32 %v124, %v116
    %v129 = vmul.f32 %v125, %v117
    %v130 = vsub.f32 %v114, 0.055555556
    %v131 = vsub.f32 %v115, 0.055555556
    %v132 = vsub.f32 %v116, 0.055555556
    %v133 = vsub.f32 %v117, 0.055555556
    %v134 = vsel %vm118, %v126, %v130
    %v135 = vsel %vm119, %v127, %v131
    %v136 = vsel %vm120, %v128, %v132
    %v137 = vsel %vm121, %v129, %v133
    %v138 = vld [vmem:[#allocation2] sm:$0xff]
    %v139 = vld [vmem:[#allocation2 + $0x8] sm:$0xff]
    %v140 = vld [vmem:[#allocation2 + $0x10] sm:$0xff]
    %v141 = vld [vmem:[#allocation2 + $0x18] sm:$0xff]
    %v142 = vld [vmem:[#allocation2 + $0x20] sm:$0xff]
    %v143 = vld [vmem:[#allocation2 + $0x28] sm:$0xff]
    %v144 = vld [vmem:[#allocation2 + $0x30] sm:$0xff]
    %v145 = vld [vmem:[#allocation2 + $0x38] sm:$0xff]
    %v146 = vld [vmem:[#allocation2 + $0x40] sm:$0xff]
    %v147 = vld [vmem:[#allocation2 + $0x48] sm:$0xff]
    %v148 = vld [vmem:[#allocation2 + $0x50] sm:$0xff]
    %v149 = vld [vmem:[#allocation2 + $0x58] sm:$0xff]
    %v150 = vld [vmem:[#allocation2 + $0x60] sm:$0xff]
    %v151 = vld [vmem:[#allocation2 + $0x68] sm:$0xff]
    %v152 = vld [vmem:[#allocation2 + $0x70] sm:$0xff]
    %v153 = vld [vmem:[#allocation2 + $0x78] sm:$0xff]
    %v154 = vld [vmem:[#allocation2 + $0x80] sm:$0xff]
    %v155 = vld [vmem:[#allocation2 + $0x88] sm:$0xff]
    %v156 = vld [vmem:[#allocation2 + $0x90] sm:$0xff]
    %v157 = vld [vmem:[#allocation2 + $0x98] sm:$0xff]
    %v158 = vld [vmem:[#allocation2 + $0xa0] sm:$0xff]
    %v159 = vld [vmem:[#allocation2 + $0xa8] sm:$0xff]
    %v160 = vld [vmem:[#allocation2 + $0xb0] sm:$0xff]
    %v161 = vld [vmem:[#allocation2 + $0xb8] sm:$0xff]
    %v162 = vld [vmem:[#allocation2 + $0xc0] sm:$0xff]
    %v163 = vld [vmem:[#allocation2 + $0xc8] sm:$0xff]
    %v164 = vld [vmem:[#allocation2 + $0xd0] sm:$0xff]
    %v165 = vld [vmem:[#allocation2 + $0xd8] sm:$0xff]
    %v166 = vld [vmem:[#allocation2 + $0xe0] sm:$0xff]
    %v167 = vld [vmem:[#allocation2 + $0xe8] sm:$0xff]
    %v168 = vld [vmem:[#allocation2 + $0xf0] sm:$0xff]
    %v169 = vld [vmem:[#allocation2 + $0xf8] sm:$0xff]
    %v170 = vld [vmem:[#allocation2 + $0x100] sm:$0xff]
    %v171 = vld [vmem:[#allocation2 + $0x108] sm:$0xff]
    %v172 = vld [vmem:[#allocation2 + $0x110] sm:$0xff]
    %v173 = vld [vmem:[#allocation2 + $0x118] sm:$0xff]
    %v174 = vld [vmem:[#allocation2 + $0x120] sm:$0xff]
    %v175 = vld [vmem:[#allocation2 + $0x128] sm:$0xff]
    %v176 = vld [vmem:[#allocation2 + $0x130] sm:$0xff]
    %v177 = vld [vmem:[#allocation2 + $0x138] sm:$0xff]
    %v178 = vld [vmem:[#allocation2 + $0x140] sm:$0xff]
    %v179 = vld [vmem:[#allocation2 + $0x148] sm:$0xff]
    %v180 = vld [vmem:[#allocation2 + $0x150] sm:$0xff]
    %v181 = vld [vmem:[#allocation2 + $0x158] sm:$0xff]
    %v182 = vld [vmem:[#allocation2 + $0x160] sm:$0xff]
    %v183 = vld [vmem:[#allocation2 + $0x168] sm:$0xff]
    %v184 = vld [vmem:[#allocation2 + $0x170] sm:$0xff]
    %v185 = vld [vmem:[#allocation2 + $0x178] sm:$0xff]
    %v186 = vld [vmem:[#allocation2 + $0x180] sm:$0xff]
    %v187 = vld [vmem:[#allocation2 + $0x188] sm:$0xff]
    %v188 = vld [vmem:[#allocation2 + $0x190] sm:$0xff]
    %v189 = vld [vmem:[#allocation2 + $0x198] sm:$0xff]
    %v190 = vld [vmem:[#allocation2 + $0x1a0] sm:$0xff]
    %v191 = vld [vmem:[#allocation2 + $0x1a8] sm:$0xff]
    %v192 = vld [vmem:[#allocation2 + $0x1b0] sm:$0xff]
    %v193 = vld [vmem:[#allocation2 + $0x1b8] sm:$0xff]
    %v194 = vld [vmem:[#allocation2 + $0x1c0] sm:$0xff]
    %v195 = vld [vmem:[#allocation2 + $0x1c8] sm:$0xff]
    %v196 = vld [vmem:[#allocation2 + $0x1d0] sm:$0xff]
    %v197 = vld [vmem:[#allocation2 + $0x1d8] sm:$0xff]
    %v198 = vld [vmem:[#allocation2 + $0x1e0] sm:$0xff]
    %v199 = vld [vmem:[#allocation2 + $0x1e8] sm:$0xff]
    %v200 = vld [vmem:[#allocation2 + $0x1f0] sm:$0xff]
    %v201 = vld [vmem:[#allocation2 + $0x1f8] sm:$0xff]
    %202 = vmatpush.msra.mxu0 %v153
    %203 = vmatpush.msra.mxu0 %v152
    %204 = vmatpush.msra.mxu0 %v151
    %205 = vmatpush.msra.mxu0 %v150
    %206 = vmatpush.msra.mxu0 %v149
    %207 = vmatpush.msra.mxu0 %v148
    %208 = vmatpush.msra.mxu0 %v147
    %209 = vmatpush.msra.mxu0 %v146
    %210 = vmatpush.msra.mxu0 %v145
    %211 = vmatpush.msra.mxu0 %v144
    %212 = vmatpush.msra.mxu0 %v143
    %213 = vmatpush.msra.mxu0 %v142
    %214 = vmatpush.msra.mxu0 %v141
    %215 = vmatpush.msra.mxu0 %v140
    %216 = vmatpush.msra.mxu0 %v139
    %217 = vmatpush.msra.mxu0 %v138
    %218 = vmatmul.f32.gmra.mxu0 %v134
    %v219 = vpop.f32.mrf.mxu0
    %v220 = vadd.f32 0.0, %v219
    %221 = vdwg.mxu0
    %222 = vmatpush.msra.mxu0 %v169
    %223 = vmatpush.msra.mxu0 %v168
    %224 = vmatpush.msra.mxu0 %v167
    %225 = vmatpush.msra.mxu0 %v166
    %226 = vmatpush.msra.mxu0 %v165
    %227 = vmatpush.msra.mxu0 %v164
    %228 = vmatpush.msra.mxu0 %v163
    %229 = vmatpush.msra.mxu0 %v162
    %230 = vmatpush.msra.mxu0 %v161
    %231 = vmatpush.msra.mxu0 %v160
    %232 = vmatpush.msra.mxu0 %v159
    %233 = vmatpush.msra.mxu0 %v158
    %234 = vmatpush.msra.mxu0 %v157
    %235 = vmatpush.msra.mxu0 %v156
    %236 = vmatpush.msra.mxu0 %v155
    %237 = vmatpush.msra.mxu0 %v154
    %238 = vmatmul.f32.gmra.mxu0 %v135
    %v239 = vpop.f32.mrf.mxu0
    %v240 = vadd.f32 %v220, %v239
    %241 = vdwg.mxu0
    %242 = vmatpush.msra.mxu0 %v185
    %243 = vmatpush.msra.mxu0 %v184
    %244 = vmatpush.msra.mxu0 %v183
    %245 = vmatpush.msra.mxu0 %v182
    %246 = vmatpush.msra.mxu0 %v181
    %247 = vmatpush.msra.mxu0 %v180
    %248 = vmatpush.msra.mxu0 %v179
    %249 = vmatpush.msra.mxu0 %v178
    %250 = vmatpush.msra.mxu0 %v177
    %251 = vmatpush.msra.mxu0 %v176
    %252 = vmatpush.msra.mxu0 %v175
    %253 = vmatpush.msra.mxu0 %v174
    %254 = vmatpush.msra.mxu0 %v173
    %255 = vmatpush.msra.mxu0 %v172
    %256 = vmatpush.msra.mxu0 %v171
    %257 = vmatpush.msra.mxu0 %v170
    %258 = vmatmul.f32.gmra.mxu0 %v136
    %v259 = vpop.f32.mrf.mxu0
    %v260 = vadd.f32 %v240, %v259
    %261 = vdwg.mxu0
    %262 = vmatpush.msra.mxu0 %v201
    %263 = vmatpush.msra.mxu0 %v200
    %264 = vmatpush.msra.mxu0 %v199
    %265 = vmatpush.msra.mxu0 %v198
    %266 = vmatpush.msra.mxu0 %v197
    %267 = vmatpush.msra.mxu0 %v196
    %268 = vmatpush.msra.mxu0 %v195
    %269 = vmatpush.msra.mxu0 %v194
    %270 = vmatpush.msra.mxu0 %v193
    %271 = vmatpush.msra.mxu0 %v192
    %272 = vmatpush.msra.mxu0 %v191
    %273 = vmatpush.msra.mxu0 %v190
    %274 = vmatpush.msra.mxu0 %v189
    %275 = vmatpush.msra.mxu0 %v188
    %276 = vmatpush.msra.mxu0 %v187
    %277 = vmatpush.msra.mxu0 %v186
    %278 = vmatmul.f32.gmra.mxu0 %v137
    %v279 = vpop.f32.mrf.mxu0
    %v280 = vadd.f32 %v260, %v279
    %281 = vdwg.mxu0
    %v282 = vmul.f32 %v280, %v99
    %v283 = vld [vmem:[#allocation8] sm:$0xff]
    %vm284 = vcmp.eq.s32.totalorder %v95, 1
    %v285 = vsel %vm284, 1, 0
    %v286 = vcvt.s32.f32 %v285
    %v287 = vmul.f32 %v286, 2.0
    %v288 = vsub.f32 %v287, 1.0
    %v289 = vmul.f32 %v283, %v288
    %v290 = vmul.f32 %v289, 2.0
    %v291 = vadd.f32 %v290, 1.0
    %v292 = vmul.f32 %v286, 0.25
    %v293 = vsub.f32 1.0, %v286
    %v294 = vmul.f32 %v293, 0.75
    %v295 = vadd.f32 %v292, %v294
    %v296 = vsub.f32 0.0, %v291
    %v297 = vmax.f32 %v296, 0.0
    %v298 = vand.u32 2147483647, %v291
    %v299 = vsub.f32 0.0, %v298
    %v300 = vmul.f32 %v299, 1.442695
    %v301 = vpow.pop %v300
    %v302 = vadd.f32 %v301, 1.0
    %v303 = vlog2.pop %v302
    %v304 = vmul.f32 %v303, 0.6931472
    %v305 = vadd.f32 %v297, %v304
    %v306 = vmul.f32 %v295, 0.5
    %v307 = vmul.f32 %v306, %v305
    %v308 = vmul.f32 %v307, %v101
    %v309 = vrot.slane %v282, 4
    %v310 = vadd.f32 %v282, %v309
    %v311 = vrot.slane %v310, 2
    %v312 = vadd.f32 %v310, %v311
    %v313 = vrot.slane %v312, 1
    %v314 = vadd.f32 %v312, %v313
    %315 = vst [vmem:[#allocation11] sm:$0x1] %v314
    %v316 = vrot.slane %v308, 4
    %v317 = vadd.f32 %v308, %v316
    %v318 = vrot.slane %v317, 2
    %v319 = vadd.f32 %v317, %v318
    %v320 = vrot.slane %v319, 1
    %v321 = vadd.f32 %v319, %v320
    %322 = vst [vmem:[#allocation12] sm:$0x1] %v321
    %v323 = vrot.slane %v99, 4
    %v324 = vadd.f32 %v99, %v323
    %v325 = vrot.slane %v324, 2
    %v326 = vadd.f32 %v324, %v325
    %v327 = vrot.slane %v326, 1
    %v328 = vadd.f32 %v326, %v327
    %329 = vst [vmem:[#allocation14] sm:$0x1] %v328
    // Predicated region
    $region42: #{tpu_custom_call.1} parent=1 // pred_check
      _
    $region43: #{tpu_custom_call.1} parent=1 // pred_check_branch
      %331 = sbr.rel (0) target = $region45
    $region44: #{tpu_custom_call.1} parent=1 // pred_region
      %333 = vsyncadd [#allocation4], 0
      %s335 = sshll.u32 [#allocation11], 4
      %s336 = int_to_ptr.vmem [resolvable:$true] %s335
      %s337 = sshll.u32 %s5, 4
      %s338 = int_to_ptr.hbm [resolvable:$true] %s337
      %340 = dma.vmem_to_hbm [thread:$0]  %s336, 16, %s338, [#allocation4]
    $region45: #{tpu_custom_call.1} parent=1 // pred_fallthru
      _
    // Predicated region
    $region46: #{tpu_custom_call.1} parent=1 // pred_check
      _
    $region47: #{tpu_custom_call.1} parent=1 // pred_check_branch
      %342 = sbr.rel (0) target = $region49
    $region48: #{tpu_custom_call.1} parent=1 // pred_region
      %344 = vsyncadd [#allocation13], 0
      %s346 = sshll.u32 [#allocation12], 4
      %s347 = int_to_ptr.vmem [resolvable:$true] %s346
      %s348 = sshll.u32 %s6, 4
      %s349 = int_to_ptr.hbm [resolvable:$true] %s348
      %351 = dma.vmem_to_hbm [thread:$0]  %s347, 16, %s349, [#allocation13]
    $region49: #{tpu_custom_call.1} parent=1 // pred_fallthru
      _
    // Predicated region
    $region50: #{tpu_custom_call.1} parent=1 // pred_check
      _
    $region51: #{tpu_custom_call.1} parent=1 // pred_check_branch
      %353 = sbr.rel (0) target = $region53
    $region52: #{tpu_custom_call.1} parent=1 // pred_region
      %355 = vsyncadd [#allocation13], 0
      %s357 = sshll.u32 [#allocation14], 4
      %s358 = int_to_ptr.vmem [resolvable:$true] %s357
      %s359 = sshll.u32 %s7, 4
      %s360 = int_to_ptr.hbm [resolvable:$true] %s359
      %362 = dma.vmem_to_hbm [thread:$0]  %s358, 16, %s360, [#allocation13]
    $region53: #{tpu_custom_call.1} parent=1 // pred_fallthru
      _
    // Predicated region
    $region54: #{tpu_custom_call.1} parent=1 // pred_check
      _
    $region55: #{tpu_custom_call.1} parent=1 // pred_check_branch
      %364 = sbr.rel (0) target = $region57
    $region56: #{tpu_custom_call.1} parent=1 // pred_region
      %366 = dma.done [#allocation4], 16
    $region57: #{tpu_custom_call.1} parent=1 // pred_fallthru
      _
    // Predicated region
    $region58: #{tpu_custom_call.1} parent=1 // pred_check
      _
    $region59: #{tpu_custom_call.1} parent=1 // pred_check_branch
      %368 = sbr.rel (0) target = $region61
    $region60: #{tpu_custom_call.1} parent=1 // pred_region
      %370 = dma.done [#allocation13], 16
    $region61: #{tpu_custom_call.1} parent=1 // pred_fallthru
      _
    // Predicated region
    $region62: #{tpu_custom_call.1} parent=1 // pred_check
      _
    $region63: #{tpu_custom_call.1} parent=1 // pred_check_branch
      %372 = sbr.rel (0) target = $region65
    $region64: #{tpu_custom_call.1} parent=1 // pred_region
      %374 = dma.done [#allocation13], 16
    $region65: #{tpu_custom_call.1} parent=1 // pred_fallthru
      _
    %375 = vsyncpa [#allocation3], 1
    %376 = vsyncpa [#allocation6], 1
    %377 = vsyncpa [#allocation9], 1
    %378 = vsyncpa [#allocation4], 1
    %379 = vsyncpa [#allocation13], 1

</llo_original>
